<compile_context>
chip_gen: v5e
topology: v5e:2x2
jax: 0.10.0
libtpu: 0.0.40
codegen_flags: <defaults>
</compile_context>

<pallas_src>
import math

import numpy as np

import jax
import jax.numpy as jnp
from jax.experimental import pallas as pl
from jax.experimental.pallas import tpu as pltpu


# ---------------------------------------------------------------------------
# Fused sincos with a single shared range reduction.
# Valid for |h| up to ~8192 (here |h| <= 5000 * max|noise_level|), which is the
# regime of this module; for unbounded args use jnp.sin/jnp.cos instead.
# ---------------------------------------------------------------------------
_TWO_OVER_PI = 0.6366197723675814
# pi/2 split into three f32-exact chunks (2x Cephes DP1/DP2/DP3 for pi/4):
# n * chunk is exact for |n| < 2^12, so the reduction loses almost no bits.
_PIO2_HI = 1.5703125
_PIO2_MID = 4.837512969970703125e-4
_PIO2_LO = 7.54978995489188216e-8
# Cephes single-precision minimax coefficients on |r| <= pi/4.
_S1, _S2, _S3 = -1.6666654611e-1, 8.3321608736e-3, -1.9515295891e-4
_C1, _C2, _C3 = 4.166664568298827e-2, -1.388731625493765e-3, 2.443315711809948e-5


def _sincos(h):
    """Return (sin(h), cos(h)) sharing one Cody-Waite range reduction."""
    n = jnp.round(h * _TWO_OVER_PI)                  # nearest multiple of pi/2
    q = n.astype(jnp.int32)                          # quadrant
    r = ((h - n * _PIO2_HI) - n * _PIO2_MID) - n * _PIO2_LO
    r2 = r * r
    sin_r = r + r * r2 * (_S1 + r2 * (_S2 + r2 * _S3))
    cos_r = 1.0 - 0.5 * r2 + r2 * r2 * (_C1 + r2 * (_C2 + r2 * _C3))
    swap = (q & 1) != 0
    s = jnp.where(swap, cos_r, sin_r)
    c = jnp.where(swap, sin_r, cos_r)
    sin_h = jnp.where((q & 2) != 0, -s, s)
    cos_h = jnp.where(((q + 1) & 2) != 0, -c, c)
    return sin_h, cos_h


# ---------------------------------------------------------------------------
# Kernel
# ---------------------------------------------------------------------------
def _make_kernel(half: int, use_mxu: bool, split_output: bool):
    def kernel(noise_ref, factor_ref, out_ref):
        nl = noise_ref[...]                          # (tb, 1)   f32
        fac = factor_ref[...]                        # (1, half) f32, VMEM-resident
        if use_mxu:
            # K=1 matmul: the MXU slot is otherwise idle, and this removes the
            # lane-broadcast + multiply from the (binding) VALU.
            h = jnp.dot(nl, fac, preferred_element_type=jnp.float32)
        else:
            h = nl * fac                             # VPU outer product
        sin_h, cos_h = _sincos(h)                    # (tb, half) each
        if split_output:
            # out_ref block = (2, tb, half): each slab store is lane-dense
            # starting at lane 0 (no masked vst at a non-128 lane offset).
            out_ref[0] = sin_h.astype(out_ref.dtype)
            out_ref[1] = cos_h.astype(out_ref.dtype)
        else:
            # half % 128 == 0: both slab stores are lane-aligned dense vst.
            out_ref[:, :half] = sin_h.astype(out_ref.dtype)
            out_ref[:, half:] = cos_h.astype(out_ref.dtype)
        # No scratch staging -> keeps v5e's single vst slot free.
    return kernel


# ---------------------------------------------------------------------------
# Wrapper / tiling policy
# ---------------------------------------------------------------------------
def make_factor(hidden_size: int) -> jnp.ndarray:
    """Deterministic buffer init matching the PyTorch __init__ (f64 -> f32)."""
    k = np.arange(0, hidden_size, 2, dtype=np.float64)
    factor = 5000.0 * np.exp(k * (-math.log(10000.0) / hidden_size))
    return jnp.asarray(factor, dtype=jnp.float32)[None, :]   # (1, hidden_size // 2)


def _round_up(x: int, m: int) -> int:
    return ((x + m - 1) // m) * m


def _out_vmem_budget() -> int:
    """Byte budget for the double-buffered output tile (generation-aware)."""
    try:
        cap = int(pltpu.get_tpu_info().vmem_capacity_bytes)
    except Exception:
        cap = 64 << 20   # conservative (v7x-sized) fallback
    # Keep the double-buffered output well under a quarter of physical VMEM so
    # the scoped limit always has headroom (v7x: 16 MiB; v5e/v6e: 32 MiB).
    return max(8 << 20, min(32 << 20, cap // 4))


def _choose_batch_tile(B: int, H: int, out_itemsize: int,
                       out_vmem_budget: int, target_steps: int = 4) -> int:
    if B <= 8:
        return B  # tiny: single step, block == full dims (always legal)
    # Largest multiple-of-8 row count whose double-buffered output fits budget.
    rows_budget = max(8, (out_vmem_budget // (2 * H * out_itemsize)) // 8 * 8)
    # Aim for several grid steps: >= 2 so v7x megacore can shard the batch
    # axis, ~4 so the output writeback pipelines against compute on all gens.
    steps = max(2, min(target_steps, _round_up(B, 8) // 8))
    tb_from_steps = _round_up(-(-B // steps), 8)
    return max(8, min(rows_budget, tb_from_steps))


def noise_level_positional_encoding(noise_level: jnp.ndarray,
                                    factor: jnp.ndarray,
                                    *,
                                    out_dtype=jnp.float32) -> jnp.ndarray:
    """noise_level: (B, 1) f32, factor: (1, H/2) f32 -> (B, H) out_dtype.

    Pass out_dtype=jnp.bfloat16 to halve the dominant HBM writeback when the
    consumer accepts bf16 (default float32 matches the PyTorch module).
    """
    B = noise_level.shape[0]
    half = factor.shape[1]
    H = 2 * half
    out_itemsize = jnp.dtype(out_dtype).itemsize

    aligned = (half % 128 == 0)
    tb = _choose_batch_tile(B, H, out_itemsize, _out_vmem_budget())
    grid = (pl.cdiv(B, tb),)
    use_mxu = aligned and tb >= 8   # MXU offload only on production shapes

    # VMEM actually used: double-buffered output + double-buffered noise
    # column + resident factor.  Limit derived from that (not a hard 32 MiB),
    # capped at 48 MiB so it never approaches v7x's 64 MiB physical VMEM.
    vmem_needed = 2 * tb * H * out_itemsize + 2 * tb * 4 + half * 4
    vmem_limit = int(min(48 << 20, max(16 << 20, 2 * vmem_needed)))

    compiler_params = pltpu.CompilerParams(
        dimension_semantics=("parallel",),    # megacore sharding on v7x
        vmem_limit_bytes=vmem_limit,
    )
    cost = pl.CostEstimate(
        flops=2 * B * half,                   # outer product
        transcendentals=B * H,                # sin + cos
        bytes_accessed=B * H * out_itemsize + B * 4 + half * 4,
    )
    in_specs = [
        pl.BlockSpec((tb, 1), lambda i: (i, 0)),
        pl.BlockSpec((1, half), lambda i: (0, 0)),  # constant -> VMEM-resident
    ]

    if aligned:
        return pl.pallas_call(
            _make_kernel(half, use_mxu, split_output=False),
            out_shape=jax.ShapeDtypeStruct((B, H), out_dtype),
            grid=grid,
            in_specs=in_specs,
            out_specs=pl.BlockSpec((tb, H), lambda i: (i, 0)),
            compiler_params=compiler_params,
            cost_estimate=cost,
        )(noise_level, factor)

    # Unaligned half (small/test configs): lane-dense (2, B, half) layout,
    # concatenated back to (B, H) in the wrapper.
    out2 = pl.pallas_call(
        _make_kernel(half, use_mxu, split_output=True),
        out_shape=jax.ShapeDtypeStruct((2, B, half), out_dtype),
        grid=grid,
        in_specs=in_specs,
        out_specs=pl.BlockSpec((2, tb, half), lambda i: (0, i, 0)),
        compiler_params=compiler_params,
        cost_estimate=cost,
    )(noise_level, factor)
    return jnp.concatenate((out2[0], out2[1]), axis=1)


if __name__ == "__main__":
    hidden_size = 32
    batch = 2

    key = jax.random.PRNGKey(0)
    noise_level = jax.random.uniform(key, (batch, 1), dtype=jnp.float32)
    factor = make_factor(hidden_size)

    out = noise_level_positional_encoding(noise_level, factor)
    out = jax.block_until_ready(out)

    # pure-JAX reference check
    h_ref = noise_level @ factor
    ref = jnp.concatenate([jnp.sin(h_ref), jnp.cos(h_ref)], axis=1)
    assert out.shape == (batch, hidden_size), out.shape
    max_err = float(jnp.max(jnp.abs(out - ref)))
    assert jnp.allclose(out, ref, atol=1e-5, rtol=1e-5), max_err

    print("KERNEL_OK")
</pallas_src>

<mosaic_0001>
module attributes {stable_mosaic.version = 11 : i64} {
  func.func @kernel(%arg0: i32, %arg1: memref<2x1xf32, #tpu.memory_space<vmem>>, %arg2: memref<1x16xf32, #tpu.memory_space<vmem>>, %arg3: memref<2x2x16xf32, #tpu.memory_space<vmem>>) attributes {dimension_semantics = [#tpu.dimension_semantics<parallel>], iteration_bounds = array<i64: 1>, scalar_prefetch = 0 : i64, scratch_operands = 0 : i64, tpu.core_type = #tpu.core_type<tc>, window_params = [{transform_indices = @transform_0, window_bounds = array<i64: 2, 1>}, {pipeline_mode = #tpu.pipeline_mode<synchronous>, transform_indices = @transform_1, window_bounds = array<i64: 1, 16>}, {transform_indices = @transform_2, window_bounds = array<i64: 2, 2, 16>}]} {
    %c0 = arith.constant 0 : index
    %c0_0 = arith.constant 0 : index
    %0 = vector.load %arg1[%c0, %c0_0] : memref<2x1xf32, #tpu.memory_space<vmem>>, vector<2x1xf32>
    %c0_1 = arith.constant 0 : index
    %c0_2 = arith.constant 0 : index
    %1 = vector.load %arg2[%c0_1, %c0_2] : memref<1x16xf32, #tpu.memory_space<vmem>>, vector<1x16xf32>
    %2 = vector.broadcast %0 : vector<2x1xf32> to vector<2x16xf32>
    %3 = vector.broadcast %1 : vector<1x16xf32> to vector<2x16xf32>
    %4 = arith.mulf %2, %3 : vector<2x16xf32>
    %cst = arith.constant 0.636619746 : f32
    %5 = vector.broadcast %cst : f32 to vector<2x16xf32>
    %6 = arith.mulf %4, %5 : vector<2x16xf32>
    %7 = math.roundeven %6 : vector<2x16xf32>
    %8 = arith.fptosi %7 : vector<2x16xf32> to vector<2x16xi32>
    %cst_3 = arith.constant 1.5703125 : f32
    %9 = vector.broadcast %cst_3 : f32 to vector<2x16xf32>
    %10 = arith.mulf %7, %9 : vector<2x16xf32>
    %11 = arith.subf %4, %10 : vector<2x16xf32>
    %cst_4 = arith.constant 4.83751297E-4 : f32
    %12 = vector.broadcast %cst_4 : f32 to vector<2x16xf32>
    %13 = arith.mulf %7, %12 : vector<2x16xf32>
    %14 = arith.subf %11, %13 : vector<2x16xf32>
    %cst_5 = arith.constant 7.549790e-08 : f32
    %15 = vector.broadcast %cst_5 : f32 to vector<2x16xf32>
    %16 = arith.mulf %7, %15 : vector<2x16xf32>
    %17 = arith.subf %14, %16 : vector<2x16xf32>
    %18 = arith.mulf %17, %17 : vector<2x16xf32>
    %19 = arith.mulf %17, %18 : vector<2x16xf32>
    %cst_6 = arith.constant -1.95152956E-4 : f32
    %20 = vector.broadcast %cst_6 : f32 to vector<2x16xf32>
    %21 = arith.mulf %18, %20 : vector<2x16xf32>
    %cst_7 = arith.constant 0.00833216123 : f32
    %22 = vector.broadcast %cst_7 : f32 to vector<2x16xf32>
    %23 = arith.addf %22, %21 : vector<2x16xf32>
    %24 = arith.mulf %18, %23 : vector<2x16xf32>
    %cst_8 = arith.constant -0.166666552 : f32
    %25 = vector.broadcast %cst_8 : f32 to vector<2x16xf32>
    %26 = arith.addf %25, %24 : vector<2x16xf32>
    %27 = arith.mulf %19, %26 : vector<2x16xf32>
    %28 = arith.addf %17, %27 : vector<2x16xf32>
    %cst_9 = arith.constant 5.000000e-01 : f32
    %29 = vector.broadcast %cst_9 : f32 to vector<2x16xf32>
    %30 = arith.mulf %29, %18 : vector<2x16xf32>
    %cst_10 = arith.constant 1.000000e+00 : f32
    %31 = vector.broadcast %cst_10 : f32 to vector<2x16xf32>
    %32 = arith.subf %31, %30 : vector<2x16xf32>
    %33 = arith.mulf %18, %18 : vector<2x16xf32>
    %cst_11 = arith.constant 2.44331568E-5 : f32
    %34 = vector.broadcast %cst_11 : f32 to vector<2x16xf32>
    %35 = arith.mulf %18, %34 : vector<2x16xf32>
    %cst_12 = arith.constant -0.00138873165 : f32
    %36 = vector.broadcast %cst_12 : f32 to vector<2x16xf32>
    %37 = arith.addf %36, %35 : vector<2x16xf32>
    %38 = arith.mulf %18, %37 : vector<2x16xf32>
    %cst_13 = arith.constant 0.0416666456 : f32
    %39 = vector.broadcast %cst_13 : f32 to vector<2x16xf32>
    %40 = arith.addf %39, %38 : vector<2x16xf32>
    %41 = arith.mulf %33, %40 : vector<2x16xf32>
    %42 = arith.addf %32, %41 : vector<2x16xf32>
    %c1_i32 = arith.constant 1 : i32
    %43 = vector.broadcast %c1_i32 : i32 to vector<2x16xi32>
    %44 = arith.andi %8, %43 : vector<2x16xi32>
    %c0_i32 = arith.constant 0 : i32
    %45 = vector.broadcast %c0_i32 : i32 to vector<2x16xi32>
    %46 = arith.cmpi ne, %44, %45 : vector<2x16xi32>
    %47 = arith.select %46, %42, %28 : vector<2x16xi1>, vector<2x16xf32>
    %48 = arith.select %46, %28, %42 : vector<2x16xi1>, vector<2x16xf32>
    %c2_i32 = arith.constant 2 : i32
    %49 = vector.broadcast %c2_i32 : i32 to vector<2x16xi32>
    %50 = arith.andi %8, %49 : vector<2x16xi32>
    %c0_i32_14 = arith.constant 0 : i32
    %51 = vector.broadcast %c0_i32_14 : i32 to vector<2x16xi32>
    %52 = arith.cmpi ne, %50, %51 : vector<2x16xi32>
    %cst_15 = arith.constant 0.000000e+00 : f32
    %53 = vector.broadcast %cst_15 : f32 to vector<2x16xf32>
    %54 = arith.subf %53, %47 : vector<2x16xf32>
    %55 = arith.select %52, %54, %47 : vector<2x16xi1>, vector<2x16xf32>
    %c1_i32_16 = arith.constant 1 : i32
    %56 = vector.broadcast %c1_i32_16 : i32 to vector<2x16xi32>
    %57 = arith.addi %8, %56 : vector<2x16xi32>
    %c2_i32_17 = arith.constant 2 : i32
    %58 = vector.broadcast %c2_i32_17 : i32 to vector<2x16xi32>
    %59 = arith.andi %57, %58 : vector<2x16xi32>
    %c0_i32_18 = arith.constant 0 : i32
    %60 = vector.broadcast %c0_i32_18 : i32 to vector<2x16xi32>
    %61 = arith.cmpi ne, %59, %60 : vector<2x16xi32>
    %cst_19 = arith.constant 0.000000e+00 : f32
    %62 = vector.broadcast %cst_19 : f32 to vector<2x16xf32>
    %63 = arith.subf %62, %48 : vector<2x16xf32>
    %64 = arith.select %61, %63, %48 : vector<2x16xi1>, vector<2x16xf32>
    %c0_20 = arith.constant 0 : index
    %c0_21 = arith.constant 0 : index
    %c0_22 = arith.constant 0 : index
    %65 = vector.load %arg3[%c0_20, %c0_21, %c0_22] : memref<2x2x16xf32, #tpu.memory_space<vmem>>, vector<1x2x16xf32>
    %66 = vector.shape_cast %65 : vector<1x2x16xf32> to vector<2x16xf32>
    %67 = vector.shape_cast %55 : vector<2x16xf32> to vector<1x2x16xf32>
    tpu.vector_store %arg3[%c0_20, %c0_21, %c0_22], %67 {strides = array<i32>} : memref<2x2x16xf32, #tpu.memory_space<vmem>>, vector<1x2x16xf32>,
    %c1 = arith.constant 1 : index
    %c0_23 = arith.constant 0 : index
    %c0_24 = arith.constant 0 : index
    %68 = vector.load %arg3[%c1, %c0_23, %c0_24] : memref<2x2x16xf32, #tpu.memory_space<vmem>>, vector<1x2x16xf32>
    %69 = vector.shape_cast %68 : vector<1x2x16xf32> to vector<2x16xf32>
    %70 = vector.shape_cast %64 : vector<2x16xf32> to vector<1x2x16xf32>
    tpu.vector_store %arg3[%c1, %c0_23, %c0_24], %70 {strides = array<i32>} : memref<2x2x16xf32, #tpu.memory_space<vmem>>, vector<1x2x16xf32>,
    return
  }
  func.func @transform_0(%arg0: i32) -> (i32, i32) {
    %c0_i32 = arith.constant 0 : i32
    %c0_i32_0 = arith.constant 0 : i32
    return %arg0, %c0_i32 : i32, i32
  }
  func.func @transform_1(%arg0: i32) -> (i32, i32) {
    %c0_i32 = arith.constant 0 : i32
    %c0_i32_0 = arith.constant 0 : i32
    %c0_i32_1 = arith.constant 0 : i32
    return %c0_i32, %c0_i32_0 : i32, i32
  }
  func.func @transform_2(%arg0: i32) -> (i32, i32, i32) {
    %c0_i32 = arith.constant 0 : i32
    %c0_i32_0 = arith.constant 0 : i32
    %c0_i32_1 = arith.constant 0 : i32
    return %c0_i32, %arg0, %c0_i32_0 : i32, i32, i32
  }
}

</mosaic_0001>

<llo_original>
// kernel: tpu_custom_call.1
$region0: #{tpu_custom_call.1}
  #allocation0 [shape = 'u32[]', space=smem, size = 0x4, offset = 0x4, fixed_abs, tag = 'smem constant byte address 0x4 - core index']
  #allocation1 [shape = 'u32[72,128]{1,0:T(1,128)}', space=vmem, size = 0x9000, scoped, tag = 'internal scratch']
  %s0 = inlined_call_operand.vmem [shape: f32[2,1], index: 0, kind: input, shape index: {}]
  %s1 = inlined_call_operand.vmem [shape: f32[1,16], index: 1, kind: input, shape index: {}]
  %s2 = inlined_call_operand.hbm [shape: f32[2,2,16], index: 2, kind: output, shape index: {}]
  %s3 = sld [smem:[#allocation0]]
  $region18: #{tpu_custom_call.1} parent=0
    _
  %s5 = ssub.s32 1, %s3
  %s6 = scalar_select 0, %s5, %s3
  $region1: #{tpu_custom_call.1} parent=0
    #allocation2 [shape = 'u8[2048]{0}', space=vmem, size = 0x800, scoped, tag = 'output window, operand 0, single buffered']
    #allocation3 [shape = 's32[1]{0}', space=sflag, size = 0x4, scoped, tag = 'scoped memory for tpu_custom_call.1']
    %7 = vsyncpa [#allocation3], 0
    // Predicated region
    $region2: #{tpu_custom_call.1} parent=1 // pred_check
      _
    $region3: #{tpu_custom_call.1} parent=1 // pred_check_branch
      %9 = sbr.rel (0) target = $region5
    $region4: #{tpu_custom_call.1} parent=1 // pred_region
      _
    $region5: #{tpu_custom_call.1} parent=1 // pred_fallthru
      _
    // Predicated region
    $region6: #{tpu_custom_call.1} parent=1 // pred_check
      _
    $region7: #{tpu_custom_call.1} parent=1 // pred_check_branch
      %11 = sbr.rel (0) target = $region9
    $region8: #{tpu_custom_call.1} parent=1 // pred_region
      _
    $region9: #{tpu_custom_call.1} parent=1 // pred_fallthru
      _
    %v12 = vld [vmem:[%s0] sm:$0x3]
    %v13 = vld [vmem:[%s1] sm:$0x1]
    %15 = vset.pattern.permute.xlu0 0
    %16 = vperm.xlu0 %15, %v12
    %v17 = vpop.permute.xlu0 %16
    %v20 = vperm.slane %v13, 0
    %v22 = vmul.f32 %v17, %v20
    %v23 = vmul.f32 %v22, 0.63661975
    %v24 = vround.ne.pseudo %v23
    %v25 = vcvt.f32.s32.ties.to.even %v23
    %v26 = vmul.f32 %v24, 1.5703125
    %v27 = vsub.f32 %v22, %v26
    %v28 = vmul.f32 %v24, 0.0004837513
    %v29 = vsub.f32 %v27, %v28
    %v30 = vmul.f32 %v24, 7.54979e-08
    %v31 = vsub.f32 %v29, %v30
    %v32 = vmul.f32 %v31, %v31
    %v33 = vmul.f32 %v31, %v32
    %v34 = vmul.f32 %v32, -0.00019515296
    %v35 = vadd.f32 %v34, 0.008332161
    %v36 = vmul.f32 %v32, %v35
    %v37 = vadd.f32 %v36, -0.16666655
    %v38 = vmul.f32 %v33, %v37
    %v39 = vadd.f32 %v31, %v38
    %v40 = vmul.f32 %v32, 0.5
    %v41 = vsub.f32 1.0, %v40
    %v42 = vmul.f32 %v32, %v32
    %v43 = vmul.f32 %v32, 2.4433157e-05
    %v44 = vadd.f32 %v43, -0.0013887316
    %v45 = vmul.f32 %v32, %v44
    %v46 = vadd.f32 %v45, 0.041666646
    %v47 = vmul.f32 %v42, %v46
    %v48 = vadd.f32 %v41, %v47
    %v49 = vand.u32 %v25, 1
    %vm50 = vcmp.ne.s32.totalorder %v49, 0
    %v51 = vsel %vm50, %v48, %v39
    %v52 = vsel %vm50, %v39, %v48
    %v53 = vand.u32 %v25, 2
    %vm54 = vcmp.ne.s32.totalorder %v53, 0
    %v55 = vsub.f32 0.0, %v51
    %v56 = vsel %vm54, %v55, %v51
    %v57 = vadd.s32 %v25, 1
    %v58 = vand.u32 %v57, 2
    %vm59 = vcmp.ne.s32.totalorder %v58, 0
    %v60 = vsub.f32 0.0, %v52
    %v61 = vsel %vm59, %v60, %v52
    %vm62 = vcmask 123904
    %63 = vst.msk [vmem:[#allocation2] sm:$0x3] %vm62, %v56
    %s64 = scalar_lea.vmem [#allocation2], 2
    %65 = vst.msk [vmem:[%s64] sm:$0x3] %vm62, %v61
    // Predicated region
    $region10: #{tpu_custom_call.1} parent=1 // pred_check
      _
    $region11: #{tpu_custom_call.1} parent=1 // pred_check_branch
      %67 = sbr.rel (0) target = $region13
    $region12: #{tpu_custom_call.1} parent=1 // pred_region
      %69 = vsyncadd [#allocation3], 0
      %s70 = sshll.u32 [#allocation2], 4
      %s71 = int_to_ptr.vmem [resolvable:$true] %s70
      %s72 = sshll.u32 %s2, 4
      %s73 = int_to_ptr.hbm [resolvable:$true] %s72
      %78 = dma.vmem_to_hbm [thread:$0]  %s71, 64, %s73, [#allocation3], 32, 32, 2
    $region13: #{tpu_custom_call.1} parent=1 // pred_fallthru
      _
    // Predicated region
    $region14: #{tpu_custom_call.1} parent=1 // pred_check
      _
    $region15: #{tpu_custom_call.1} parent=1 // pred_check_branch
      %80 = sbr.rel (0) target = $region17
    $region16: #{tpu_custom_call.1} parent=1 // pred_region
      %82 = dma.done [#allocation3], 64
    $region17: #{tpu_custom_call.1} parent=1 // pred_fallthru
      _
    %83 = vsyncpa [#allocation3], 1

</llo_original>
